<compile_context>
chip_gen: v7x
topology: tpu7x:2x2x1
jax: 0.10.0
libtpu: 0.0.40
codegen_flags: <defaults>
</compile_context>

<pallas_src>
import functools

import jax
import jax.numpy as jnp
from jax.experimental import pallas as pl
from jax.experimental.pallas import tpu as pltpu


def _ce_label_smooth_kernel(logits_ref, targets_ref, partial_ref, *,
                            num_classes: int, epsilon: float,
                            total_rows: int, block_rows: int):
    """One batch-block of label-smoothed CE -> lane-dense partial sum."""
    x = logits_ref[...].astype(jnp.float32)             # (TB, C)
    t = targets_ref[...]                                 # (TB, 1) int32
    TB, C = x.shape

    # Numerically stable log-softmax pieces (per row).
    m = jnp.max(x, axis=1, keepdims=True)                # (TB, 1)   XLU
    shifted = x - m                                       # (TB, C)   VPU
    lse = jnp.log(jnp.sum(jnp.exp(shifted), axis=1, keepdims=True))  # EUP+XLU

    # Smoothed target weights built from an iota compare (replaces the torch
    # scatter_-built onehot); since sum_c w_c == 1, the per-row loss is just
    # lse - sum_c w_c * shifted_c  -> a single weighted row reduction.
    base = epsilon / num_classes
    class_ids = jax.lax.broadcasted_iota(jnp.int32, (TB, C), 1)
    w = jnp.where(class_ids == t, 1.0 - epsilon + base, base)         # (TB, C)
    weighted = jnp.sum(w * shifted, axis=1, keepdims=True)            # (TB, 1)

    per_row = lse - weighted                              # (TB, 1)

    # Mask rows that belong to batch padding (batch padded to multiple of TB).
    row_ids = (pl.program_id(0) * block_rows
               + jax.lax.broadcasted_iota(jnp.int32, (TB, 1), 0))
    per_row = jnp.where(row_ids < total_rows, per_row, 0.0)

    # Two-stage reduction: per-row reductions above, block sum here.
    block_sum = jnp.sum(per_row)

    # Lane-dense (1, 8, 128) write of the partial sum (unmasked vst).
    partial_ref[...] = jnp.full(partial_ref.shape, block_sum, dtype=jnp.float32)


def cross_entropy_label_smooth(inputs: jax.Array, targets: jax.Array,
                               num_classes: int, epsilon: float,
                               *, block_rows: int | None = None) -> jax.Array:
    """inputs: (B, num_classes) float logits (f32 or bf16); targets: (B,) int labels."""
    B, C = inputs.shape
    assert C == num_classes

    # Pick a batch block: multiple of 8, f32 logits block ~<= 4 MiB so that
    # double-buffered inputs fit comfortably in VMEM on v5e/v6e/v7x.
    if block_rows is None:
        rows_fit = max(8, (4 * 1024 * 1024) // (4 * C))
        block_rows = min(1024, rows_fit)
    block_rows = max(8, (block_rows // 8) * 8)
    block_rows = min(block_rows, max(8, ((B + 7) // 8) * 8))  # no bigger than batch

    num_blocks = pl.cdiv(B, block_rows)
    padded_B = num_blocks * block_rows
    if padded_B != B:
        pad = padded_B - B
        inputs = jnp.pad(inputs, ((0, pad), (0, 0)))
        targets = jnp.pad(targets, ((0, pad),))
    targets_2d = targets.astype(jnp.int32).reshape(padded_B, 1)

    kernel = functools.partial(_ce_label_smooth_kernel,
                               num_classes=num_classes, epsilon=epsilon,
                               total_rows=B, block_rows=block_rows)

    partials = pl.pallas_call(
        kernel,
        out_shape=jax.ShapeDtypeStruct((num_blocks, 8, 128), jnp.float32),
        grid=(num_blocks,),
        in_specs=[
            pl.BlockSpec((block_rows, C), lambda i: (i, 0)),   # logits block
            pl.BlockSpec((block_rows, 1), lambda i: (i, 0)),   # targets block
        ],
        out_specs=pl.BlockSpec((1, 8, 128), lambda i: (i, 0, 0)),
        compiler_params=pltpu.CompilerParams(
            dimension_semantics=("parallel",),
            vmem_limit_bytes=32 * 1024 * 1024,
        ),
    )(inputs, targets_2d)

    # Tiny final reduction over blocks + mean-over-batch, done in the wrapper.
    return jnp.sum(partials[:, 0, 0]) * (1.0 / B)


def _reference(logits, targets, num_classes, epsilon):
    log_probs = jax.nn.log_softmax(logits.astype(jnp.float32), axis=1)
    onehot = jax.nn.one_hot(targets, num_classes, dtype=jnp.float32)
    smooth = (1.0 - epsilon) * onehot + epsilon / num_classes
    return jnp.sum(jnp.mean(-smooth * log_probs, axis=0))


if __name__ == "__main__":
    num_classes = 32
    epsilon = 0.1
    batch = 8

    key = jax.random.PRNGKey(0)
    k_logits, k_targets = jax.random.split(key)
    logits = jax.random.normal(k_logits, (batch, num_classes), dtype=jnp.float32)
    targets = jax.random.randint(k_targets, (batch,), 0, num_classes, dtype=jnp.int32)

    loss = cross_entropy_label_smooth(logits, targets, num_classes, epsilon)
    jax.block_until_ready(loss)

    ref = _reference(logits, targets, num_classes, epsilon)
    assert jnp.allclose(loss, ref, atol=1e-5, rtol=1e-5), (loss, ref)

    # Exercise the multi-block + batch-padding/masking path as well.
    batch2 = 13
    k2l, k2t = jax.random.split(jax.random.PRNGKey(1))
    logits2 = jax.random.normal(k2l, (batch2, num_classes), dtype=jnp.float32)
    targets2 = jax.random.randint(k2t, (batch2,), 0, num_classes, dtype=jnp.int32)
    loss2 = cross_entropy_label_smooth(logits2, targets2, num_classes, epsilon,
                                       block_rows=8)
    jax.block_until_ready(loss2)
    ref2 = _reference(logits2, targets2, num_classes, epsilon)
    assert jnp.allclose(loss2, ref2, atol=1e-5, rtol=1e-5), (loss2, ref2)

    # bf16 logits path (kernel casts to f32 internally).
    loss3 = cross_entropy_label_smooth(logits.astype(jnp.bfloat16), targets,
                                       num_classes, epsilon)
    jax.block_until_ready(loss3)
    assert jnp.allclose(loss3, ref, atol=2e-2, rtol=2e-2), (loss3, ref)

    print("KERNEL_OK")
</pallas_src>

<mosaic_0001>
module attributes {stable_mosaic.version = 11 : i64} {
  func.func @_ce_label_smooth_kernel(%arg0: i32, %arg1: memref<8x32xf32, #tpu.memory_space<vmem>>, %arg2: memref<8x1xi32, #tpu.memory_space<vmem>>, %arg3: memref<1x8x128xf32, #tpu.memory_space<vmem>>) attributes {dimension_semantics = [#tpu.dimension_semantics<parallel>], iteration_bounds = array<i64: 1>, scalar_prefetch = 0 : i64, scratch_operands = 0 : i64, tpu.core_type = #tpu.core_type<tc>, window_params = [{transform_indices = @transform_0, window_bounds = array<i64: 8, 32>}, {transform_indices = @transform_1, window_bounds = array<i64: 8, 1>}, {transform_indices = @transform_2, window_bounds = array<i64: 1, 8, 128>}]} {
    %c0 = arith.constant 0 : index
    %c0_0 = arith.constant 0 : index
    %0 = vector.load %arg1[%c0, %c0_0] : memref<8x32xf32, #tpu.memory_space<vmem>>, vector<8x32xf32>
    %c0_1 = arith.constant 0 : index
    %c0_2 = arith.constant 0 : index
    %1 = vector.load %arg2[%c0_1, %c0_2] : memref<8x1xi32, #tpu.memory_space<vmem>>, vector<8x1xi32>
    %cst = arith.constant dense<0xFF800000> : vector<8xf32>
    %2 = vector.multi_reduction <maximumf>, %0, %cst [1] : vector<8x32xf32> to vector<8xf32>
    %3 = vector.shape_cast %2 : vector<8xf32> to vector<8x1xf32>
    %4 = vector.broadcast %3 : vector<8x1xf32> to vector<8x32xf32>
    %5 = arith.subf %0, %4 : vector<8x32xf32>
    %6 = math.exp %5 : vector<8x32xf32>
    %cst_3 = arith.constant dense<0.000000e+00> : vector<8xf32>
    %7 = vector.multi_reduction <add>, %6, %cst_3 [1] : vector<8x32xf32> to vector<8xf32>
    %8 = vector.shape_cast %7 : vector<8xf32> to vector<8x1xf32>
    %9 = math.log %8 : vector<8x1xf32>
    %10 = tpu.iota {dimensions = array<i32: 1>} : vector<8x32xi32>
    %11 = vector.broadcast %1 : vector<8x1xi32> to vector<8x32xi32>
    %12 = arith.cmpi eq, %10, %11 : vector<8x32xi32>
    %cst_4 = arith.constant 0.903124988 : f32
    %cst_5 = arith.constant 3.125000e-03 : f32
    %13 = vector.broadcast %cst_4 : f32 to vector<8x32xf32>
    %14 = vector.broadcast %cst_5 : f32 to vector<8x32xf32>
    %15 = arith.select %12, %13, %14 : vector<8x32xi1>, vector<8x32xf32>
    %16 = arith.mulf %15, %5 : vector<8x32xf32>
    %cst_6 = arith.constant dense<0.000000e+00> : vector<8xf32>
    %17 = vector.multi_reduction <add>, %16, %cst_6 [1] : vector<8x32xf32> to vector<8xf32>
    %18 = vector.shape_cast %17 : vector<8xf32> to vector<8x1xf32>
    %19 = arith.subf %9, %18 : vector<8x1xf32>
    %c8_i32 = arith.constant 8 : i32
    %20 = arith.muli %arg0, %c8_i32 : i32
    %21 = tpu.iota {dimensions = array<i32: 0>} : vector<8x1xi32>
    %22 = vector.broadcast %20 : i32 to vector<8x1xi32>
    %23 = arith.addi %22, %21 : vector<8x1xi32>
    %c8_i32_7 = arith.constant 8 : i32
    %24 = vector.broadcast %c8_i32_7 : i32 to vector<8x1xi32>
    %25 = arith.cmpi slt, %23, %24 : vector<8x1xi32>
    %cst_8 = arith.constant 0.000000e+00 : f32
    %26 = vector.broadcast %cst_8 : f32 to vector<8x1xf32>
    %27 = arith.select %25, %19, %26 : vector<8x1xi1>, vector<8x1xf32>
    %28 = vector.shape_cast %27 : vector<8x1xf32> to vector<1x8x1xf32>
    %cst_9 = arith.constant dense<0.000000e+00> : vector<1xf32>
    %29 = vector.multi_reduction <add>, %28, %cst_9 [1, 2] : vector<1x8x1xf32> to vector<1xf32>
    %30 = vector.shape_cast %29 : vector<1xf32> to vector<1x1x1xf32>
    %31 = vector.extract %30[0, 0, 0] : f32 from vector<1x1x1xf32>
    %32 = vector.broadcast %31 : f32 to vector<1x8x128xf32>
    %c0_10 = arith.constant 0 : index
    %c0_11 = arith.constant 0 : index
    %c0_12 = arith.constant 0 : index
    %33 = vector.load %arg3[%c0_10, %c0_11, %c0_12] : memref<1x8x128xf32, #tpu.memory_space<vmem>>, vector<1x8x128xf32>
    tpu.vector_store %arg3[%c0_10, %c0_11, %c0_12], %32 {strides = array<i32>} : memref<1x8x128xf32, #tpu.memory_space<vmem>>, vector<1x8x128xf32>,
    return
  }
  func.func @transform_0(%arg0: i32) -> (i32, i32) {
    %c0_i32 = arith.constant 0 : i32
    %c0_i32_0 = arith.constant 0 : i32
    return %arg0, %c0_i32 : i32, i32
  }
  func.func @transform_1(%arg0: i32) -> (i32, i32) {
    %c0_i32 = arith.constant 0 : i32
    %c0_i32_0 = arith.constant 0 : i32
    return %arg0, %c0_i32 : i32, i32
  }
  func.func @transform_2(%arg0: i32) -> (i32, i32, i32) {
    %c0_i32 = arith.constant 0 : i32
    %c0_i32_0 = arith.constant 0 : i32
    %c0_i32_1 = arith.constant 0 : i32
    return %arg0, %c0_i32, %c0_i32_0 : i32, i32, i32
  }
}

</mosaic_0001>

<llo_original>
// kernel: tpu_custom_call.1
$region0: #{tpu_custom_call.1}
  #allocation0 [shape = 'u32[]', space=smem, size = 0x4, offset = 0x4, fixed_abs, tag = 'smem constant byte address 0x4 - core index']
  #allocation1 [shape = 'u32[144,128]{1,0:T(1,128)}', space=vmem, size = 0x12000, scoped, tag = 'internal scratch']
  %s0 = inlined_call_operand.vmem [shape: f32[8,32], index: 0, kind: input, shape index: {}]
  %s1 = inlined_call_operand.vmem [shape: s32[8,1], index: 1, kind: input, shape index: {}]
  %s2 = inlined_call_operand.hbm [shape: f32[1,8,128], index: 2, kind: output, shape index: {}]
  %s3 = sld [smem:[#allocation0]]
  $region18: #{tpu_custom_call.1} parent=0
    _
  %s5 = ssub.s32 1, %s3
  %s6 = scalar_select 0, %s5, %s3
  $region1: #{tpu_custom_call.1} parent=0
    #allocation2 [shape = 'u8[4096]{0}', space=vmem, size = 0x1000, scoped, tag = 'output window, operand 0, single buffered']
    #allocation3 [shape = 's32[1]{0}', space=sflag, size = 0x4, scoped, tag = 'scoped memory for tpu_custom_call.1']
    %7 = vsyncpa [#allocation3], 0
    // Predicated region
    $region2: #{tpu_custom_call.1} parent=1 // pred_check
      _
    $region3: #{tpu_custom_call.1} parent=1 // pred_check_branch
      %9 = sbr.rel (0) target = $region5
    $region4: #{tpu_custom_call.1} parent=1 // pred_region
      _
    $region5: #{tpu_custom_call.1} parent=1 // pred_fallthru
      _
    // Predicated region
    $region6: #{tpu_custom_call.1} parent=1 // pred_check
      _
    $region7: #{tpu_custom_call.1} parent=1 // pred_check_branch
      %11 = sbr.rel (0) target = $region9
    $region8: #{tpu_custom_call.1} parent=1 // pred_region
      _
    $region9: #{tpu_custom_call.1} parent=1 // pred_fallthru
      _
    %v12 = vld [vmem:[%s0] sm:$0xff]
    %v13 = vld [vmem:[%s1] sm:$0xff]
    %vm14 = vcmask 261120
    %v15 = vsel %vm14, %v12, -inf
    %16 = vmax.xlane.f32.xlu0 %v15
    %v17 = vpop.xlane.xlu0 %16
    %v18 = vsub.f32 %v12, %v17
    %v19 = vmul.f32 %v18, 1.442695
    %v20 = vpow.pop %v19
    %v21 = vsel %vm14, %v20, 0.0
    %22 = vadd.xlane.f32.xlu0 %v21
    %v23 = vpop.xlane.xlu0 %22
    %v24 = vlog2.pop %v23
    %v25 = vmul.f32 %v24, 0.6931472
    %v26 = vlaneseq
    %v27 = vand.u32 %v26, 127
    %28 = vset.pattern.permute.xlu0 0
    %29 = vperm.xlu0 %28, %v13
    %v30 = vpop.permute.xlu0 %29
    %vm31 = vcmp.eq.s32.totalorder %v27, %v30
    %v32 = vsel %vm31, 0.903125, 0.003125
    %v33 = vmul.f32 %v32, %v18
    %v34 = vsel %vm14, %v33, 0.0
    %35 = vadd.xlane.f32.xlu0 %v34
    %v36 = vpop.xlane.xlu0 %35
    %v37 = vsub.f32 %v25, %v36
    %s38 = smul.u32 0, 8
    %v39 = vlaneseq
    %v40 = vshrl.u32 %v39, 7
    %v41 = vstv %s38
    %v42 = vadd.s32 %v41, %v40
    %vm43 = vcmp.lt.s32.totalorder %v42, 8
    %v44 = vsel %vm43, %v37, 0.0
    %vm45 = vcmask 7168
    %v46 = vsel %vm45, %v44, 0.0
    %47 = vadd.xlane.f32.xlu0 %v46
    %v48 = vpop.xlane.xlu0 %47
    %v49 = vrot.slane %v48, 4
    %v50 = vadd.f32 %v48, %v49
    %v51 = vrot.slane %v50, 2
    %v52 = vadd.f32 %v50, %v51
    %v53 = vrot.slane %v52, 1
    %v54 = vadd.f32 %v52, %v53
    %s55 = vtos %v54
    %v56 = vstv %s55
    %57 = vst [vmem:[#allocation2] sm:$0xff] %v56
    // Predicated region
    $region10: #{tpu_custom_call.1} parent=1 // pred_check
      _
    $region11: #{tpu_custom_call.1} parent=1 // pred_check_branch
      %59 = sbr.rel (0) target = $region13
    $region12: #{tpu_custom_call.1} parent=1 // pred_region
      %s61 = ssub.s32 128, 128
      %62 = vsyncadd [#allocation3], %s61
      %s64 = sshll.u32 [#allocation2], 4
      %s65 = int_to_ptr.vmem [resolvable:$true] %s64
      %67 = dma.vmem_to_hbm [thread:$0]  %s65, 128, %s2, [#allocation3]
    $region13: #{tpu_custom_call.1} parent=1 // pred_fallthru
      _
    // Predicated region
    $region14: #{tpu_custom_call.1} parent=1 // pred_check
      _
    $region15: #{tpu_custom_call.1} parent=1 // pred_check_branch
      %69 = sbr.rel (0) target = $region17
    $region16: #{tpu_custom_call.1} parent=1 // pred_region
      %70 = dma.done [#allocation3], 128
    $region17: #{tpu_custom_call.1} parent=1 // pred_fallthru
      _
    %71 = vsyncpa [#allocation3], 1

</llo_original>
